<compile_context>
chip_gen: v7x
topology: tpu7x:2x2x1
jax: 0.10.0
libtpu: 0.0.40
codegen_flags: <defaults>
</compile_context>

<pallas_src>
import functools

import jax
import jax.numpy as jnp
from jax.experimental import pallas as pl
from jax.experimental.pallas import tpu as pltpu


def _sdpa_kernel(*refs, inv_temperature, has_bias, use_bf16_matmul):
    if has_bias:
        bias_ref, q_ref, k_ref, v_ref, out_ref, attn_ref = refs
    else:
        q_ref, k_ref, v_ref, out_ref, attn_ref = refs
        bias_ref = None

    q = q_ref[...]
    k = k_ref[...]
    if use_bf16_matmul and q.dtype == jnp.float32:
        q = q.astype(jnp.bfloat16)
        k = k.astype(jnp.bfloat16)

    # MXU matmul with f32 accumulation; fold 1/temperature into the f32 scores.
    s = jnp.einsum("bqd,bkd->bqk", q, k, preferred_element_type=jnp.float32)
    s = s * inv_temperature
    if bias_ref is not None:
        # bias is (1, tq, Lk) (shared, broadcasts over bh) or (bh, tq, Lk); bf16 -> f32
        s = s + bias_ref[...].astype(jnp.float32)

    # numerically-stable softmax over the last dim; exact reciprocal on the small
    # (bh, tq, 1) denominator so the returned attention rows sum to 1.
    m = jnp.max(s, axis=-1, keepdims=True)
    e = jnp.exp(s - m)
    inv = pl.reciprocal(jnp.sum(e, axis=-1, keepdims=True))
    attn = e * inv

    attn_ref[...] = attn.astype(attn_ref.dtype)

    v = v_ref[...]
    mm_dtype = v.dtype
    if use_bf16_matmul and v.dtype == jnp.float32:
        mm_dtype = jnp.bfloat16
        v = v.astype(mm_dtype)
    out_ref[...] = jnp.einsum(
        "bqk,bkd->bqd", attn.astype(mm_dtype), v, preferred_element_type=jnp.float32
    ).astype(out_ref.dtype)


def _vmem_budget_bytes():
    """Generation-aware per-core VMEM budget (leaves ~20% headroom for compiler scratch)."""
    cap = None
    try:
        info = pltpu.get_tpu_info()
        cap = int(getattr(info, "vmem_capacity_bytes", 0)) or None
    except Exception:
        cap = None
    if cap is None:
        try:
            kind = jax.devices()[0].device_kind.lower()
            cap = 64 * 1024 * 1024 if "v7" in kind else 128 * 1024 * 1024
        except Exception:
            cap = 64 * 1024 * 1024  # safe everywhere
    return int(cap * 0.8)


def scaled_dot_product_attention(
    q, k, v, mask=None, *, temperature, attn_dtype=None, use_bf16_matmul=False
):
    """Eval-mode ScaledDotProductAttention forward.

    q: (B, H, Lq, Dk), k: (B, H, Lk, Dk), v: (B, H, Lk, Dv),
    mask: broadcastable to (B, H, Lq, Lk), entries == 0 are masked; or None.
    Returns (output (B, H, Lq, Dv), attn (B, H, Lq, Lk) in attn_dtype or q.dtype).
    """
    B, H, Lq, Dk = q.shape
    Lk = k.shape[2]
    Dv = v.shape[3]
    BH = B * H

    in_isz = jnp.dtype(q.dtype).itemsize
    attn_dtype = jnp.dtype(attn_dtype) if attn_dtype is not None else jnp.dtype(q.dtype)
    attn_isz = attn_dtype.itemsize

    qf = q.reshape(BH, Lq, Dk)
    kf = k.reshape(BH, Lk, Dk)
    vf = v.reshape(BH, Lk, Dv)

    # --- mask -> additive bf16 bias (0 / -1e9). mask=None compiles a bias-free kernel. ---
    if mask is None:
        bias = None
        bias_shared = True
    else:
        m4 = jnp.asarray(mask)
        while m4.ndim < 4:
            m4 = m4[None]
        bias_shared = (m4.shape[0] == 1 and m4.shape[1] == 1)
        # TODO(synk): masks broadcasting over H but not B could stay (B, Lq, Lk) and be
        # reused across heads via the index_map; broadcast to BH copies for now.
        if bias_shared:
            m2 = jnp.broadcast_to(m4, (1, 1, Lq, Lk)).reshape(1, Lq, Lk)
        else:
            m2 = jnp.broadcast_to(m4, (B, H, Lq, Lk)).reshape(BH, Lq, Lk)
        bias = jnp.where(m2 == 0, -1e9, 0.0).astype(jnp.bfloat16)

    # --- VMEM-budget-driven tile selection ------------------------------------------
    budget = _vmem_budget_bytes()

    def tile_bytes(bh, tq):
        # double-buffered pipeline blocks (q, k, v, out, attn, bias)
        dbuf = 2 * bh * (tq * Dk + Lk * Dk + Lk * Dv + tq * Dv) * in_isz
        dbuf += 2 * bh * tq * Lk * attn_isz
        if bias is not None:
            bias_rows = 1 if bias_shared else bh
            dbuf += 2 * bias_rows * tq * Lk * 2  # bf16 bias
        # live f32 intermediates materialized by the body (scores, exp, attn, max/denom, out)
        live = bh * tq * (3 * Lk + Dv + 8) * 4
        return dbuf + live

    # Lq tiling: keep tq = Lq when a single-bh block fits; otherwise tile Lq (mult. of 8).
    tq = Lq
    if tile_bytes(1, Lq) > budget:
        for t in (1024, 512, 256, 128, 64, 32, 16, 8):
            if t >= Lq:
                continue
            tq = t
            if tile_bytes(1, t) <= budget:
                break
    if tq == Lq:
        lq_pad = Lq
    else:
        lq_pad = ((Lq + tq - 1) // tq) * tq
    n_q = lq_pad // tq

    # bh tiling: largest divisor of BH that fits the budget, keeping >= 2 total grid
    # steps for pipelining and preferring an even step count (v7x: 2 TensorCores).
    divisors = [d for d in range(1, BH + 1) if BH % d == 0]
    fitting = sorted([d for d in divisors if tile_bytes(d, tq) <= budget] or [1],
                     reverse=True)

    def total_steps(d):
        return (BH // d) * n_q

    pool = [d for d in fitting if total_steps(d) >= 2] or fitting
    even = [d for d in pool if total_steps(d) % 2 == 0]
    bh_tile = (even or pool)[0]
    n_blk = BH // bh_tile

    # --- pad Lq to a multiple of tq (padded rows are discarded after the call) -------
    if lq_pad != Lq:
        qf = jnp.pad(qf, ((0, 0), (0, lq_pad - Lq), (0, 0)))
        if bias is not None:
            bias = jnp.pad(bias, ((0, 0), (0, lq_pad - Lq), (0, 0)))

    # --- BlockSpecs: K/V are indexed only by the bh axis -> VMEM-resident across the
    #     innermost Lq axis; q/out/attn move with both axes. ---------------------------
    q_spec = pl.BlockSpec((bh_tile, tq, Dk), lambda i, j: (i, j, 0))
    k_spec = pl.BlockSpec((bh_tile, Lk, Dk), lambda i, j: (i, 0, 0))
    v_spec = pl.BlockSpec((bh_tile, Lk, Dv), lambda i, j: (i, 0, 0))
    out_specs = [
        pl.BlockSpec((bh_tile, tq, Dv), lambda i, j: (i, j, 0)),
        pl.BlockSpec((bh_tile, tq, Lk), lambda i, j: (i, j, 0)),
    ]

    in_specs = [q_spec, k_spec, v_spec]
    inputs = [qf, kf, vf]
    if bias is not None:
        if bias_shared:
            bias_spec = pl.BlockSpec((1, tq, Lk), lambda i, j: (0, j, 0))
        else:
            bias_spec = pl.BlockSpec((bh_tile, tq, Lk), lambda i, j: (i, j, 0))
        in_specs = [bias_spec] + in_specs
        inputs = [bias] + inputs

    kernel = functools.partial(
        _sdpa_kernel,
        inv_temperature=float(1.0 / temperature),
        has_bias=bias is not None,
        use_bf16_matmul=bool(use_bf16_matmul),
    )

    out_f, attn_f = pl.pallas_call(
        kernel,
        out_shape=(
            jax.ShapeDtypeStruct((BH, lq_pad, Dv), q.dtype),
            jax.ShapeDtypeStruct((BH, lq_pad, Lk), attn_dtype),
        ),
        grid_spec=pltpu.PrefetchScalarGridSpec(
            num_scalar_prefetch=0,
            grid=(n_blk, n_q),
            in_specs=in_specs,
            out_specs=out_specs,
        ),
        compiler_params=pltpu.CompilerParams(
            dimension_semantics=("parallel", "parallel"),
            vmem_limit_bytes=budget,
        ),
    )(*inputs)

    out = out_f[:, :Lq].reshape(B, H, Lq, Dv)
    attn = attn_f[:, :Lq].reshape(B, H, Lq, Lk)
    return out, attn


def _reference(q, k, v, mask, temperature):
    scores = jnp.einsum("bhqd,bhkd->bhqk", q / temperature, k)
    if mask is not None:
        scores = jnp.where(mask == 0, -1e9, scores)
    attn = jax.nn.softmax(scores, axis=-1)
    out = jnp.einsum("bhqk,bhkd->bhqd", attn, v)
    return out, attn


if __name__ == "__main__":
    B, H, Lq, Lk, Dk, Dv = 2, 2, 8, 8, 16, 16
    temperature = float(Dk) ** 0.5

    key = jax.random.PRNGKey(0)
    kq, kk, kv, km1, km2 = jax.random.split(key, 5)
    q = jax.random.normal(kq, (B, H, Lq, Dk), dtype=jnp.float32)
    k = jax.random.normal(kk, (B, H, Lk, Dk), dtype=jnp.float32)
    v = jax.random.normal(kv, (B, H, Lk, Dv), dtype=jnp.float32)

    # 1) shared mask (broadcast over batch/heads) -> single small bias block
    mask_shared = (jax.random.uniform(km1, (1, 1, Lq, Lk)) > 0.2).astype(jnp.int32)
    out, attn = scaled_dot_product_attention(q, k, v, mask_shared, temperature=temperature)
    out = jax.block_until_ready(out)
    attn = jax.block_until_ready(attn)
    out_ref, attn_ref = _reference(q, k, v, mask_shared, temperature)
    assert jnp.allclose(out, out_ref, atol=2e-3, rtol=2e-3), "output mismatch (shared mask)"
    assert jnp.allclose(attn, attn_ref, atol=2e-3, rtol=2e-3), "attn mismatch (shared mask)"

    # 2) per-batch-head mask -> per-bh bias blocks
    mask_full = (jax.random.uniform(km2, (B, H, Lq, Lk)) > 0.2).astype(jnp.int32)
    out_b, attn_b = scaled_dot_product_attention(q, k, v, mask_full, temperature=temperature)
    out_b = jax.block_until_ready(out_b)
    attn_b = jax.block_until_ready(attn_b)
    out_b_ref, attn_b_ref = _reference(q, k, v, mask_full, temperature)
    assert jnp.allclose(out_b, out_b_ref, atol=2e-3, rtol=2e-3), "output mismatch (full mask)"
    assert jnp.allclose(attn_b, attn_b_ref, atol=2e-3, rtol=2e-3), "attn mismatch (full mask)"

    # 3) mask=None -> bias-free kernel variant
    out2, attn2 = scaled_dot_product_attention(q, k, v, None, temperature=temperature)
    out2 = jax.block_until_ready(out2)
    attn2 = jax.block_until_ready(attn2)
    out2_ref, attn2_ref = _reference(q, k, v, None, temperature)
    assert jnp.allclose(out2, out2_ref, atol=2e-3, rtol=2e-3), "output mismatch (no mask)"
    assert jnp.allclose(attn2, attn2_ref, atol=2e-3, rtol=2e-3), "attn mismatch (no mask)"

    print("KERNEL_OK")
</pallas_src>

<mosaic_0001>
module attributes {stable_mosaic.version = 11 : i64} {
  func.func @_sdpa_kernel(%arg0: i32, %arg1: i32, %arg2: memref<1x8x8xbf16, #tpu.memory_space<vmem>>, %arg3: memref<2x8x16xf32, #tpu.memory_space<vmem>>, %arg4: memref<2x8x16xf32, #tpu.memory_space<vmem>>, %arg5: memref<2x8x16xf32, #tpu.memory_space<vmem>>, %arg6: memref<2x8x16xf32, #tpu.memory_space<vmem>>, %arg7: memref<2x8x8xf32, #tpu.memory_space<vmem>>) attributes {dimension_semantics = [#tpu.dimension_semantics<parallel>, #tpu.dimension_semantics<parallel>], iteration_bounds = array<i64: 2, 1>, scalar_prefetch = 0 : i64, scratch_operands = 0 : i64, tpu.core_type = #tpu.core_type<tc>, window_params = [{transform_indices = @transform_0, window_bounds = array<i64: 1, 8, 8>}, {transform_indices = @transform_1, window_bounds = array<i64: 2, 8, 16>}, {transform_indices = @transform_2, window_bounds = array<i64: 2, 8, 16>}, {transform_indices = @transform_3, window_bounds = array<i64: 2, 8, 16>}, {transform_indices = @transform_4, window_bounds = array<i64: 2, 8, 16>}, {transform_indices = @transform_5, window_bounds = array<i64: 2, 8, 8>}]} {
    %c0 = arith.constant 0 : index
    %c0_0 = arith.constant 0 : index
    %c0_1 = arith.constant 0 : index
    %0 = vector.load %arg3[%c0, %c0_0, %c0_1] : memref<2x8x16xf32, #tpu.memory_space<vmem>>, vector<2x8x16xf32>
    %c0_2 = arith.constant 0 : index
    %c0_3 = arith.constant 0 : index
    %c0_4 = arith.constant 0 : index
    %1 = vector.load %arg4[%c0_2, %c0_3, %c0_4] : memref<2x8x16xf32, #tpu.memory_space<vmem>>, vector<2x8x16xf32>
    "tpu.trace_start"() <{level = 10 : i32, message = "bqd,bkd->bqk"}> : () -> ()
    %cst = arith.constant dense<0.000000e+00> : vector<2x8x8xf32>
    %2 = tpu.matmul %0, %1, %cst {dimension_numbers = #tpu.dot_dimension_numbers<[2], [2], [1], [1], [0, 0, 0, 1, 1, 1], [0], [0]>} : vector<2x8x16xf32>, vector<2x8x16xf32>, vector<2x8x8xf32> -> vector<2x8x8xf32>
    "tpu.trace_stop"() : () -> ()
    %cst_5 = arith.constant 2.500000e-01 : f32
    %3 = vector.broadcast %cst_5 : f32 to vector<2x8x8xf32>
    %4 = arith.mulf %2, %3 : vector<2x8x8xf32>
    %c0_6 = arith.constant 0 : index
    %c0_7 = arith.constant 0 : index
    %c0_8 = arith.constant 0 : index
    %5 = vector.load %arg2[%c0_6, %c0_7, %c0_8] : memref<1x8x8xbf16, #tpu.memory_space<vmem>>, vector<1x8x8xbf16>
    %6 = arith.extf %5 : vector<1x8x8xbf16> to vector<1x8x8xf32>
    %7 = vector.broadcast %6 : vector<1x8x8xf32> to vector<2x8x8xf32>
    %8 = arith.addf %4, %7 : vector<2x8x8xf32>
    %cst_9 = arith.constant dense<0xFF800000> : vector<2x8xf32>
    %9 = vector.multi_reduction <maximumf>, %8, %cst_9 [2] : vector<2x8x8xf32> to vector<2x8xf32>
    %10 = vector.shape_cast %9 : vector<2x8xf32> to vector<2x8x1xf32>
    %11 = vector.broadcast %10 : vector<2x8x1xf32> to vector<2x8x8xf32>
    %12 = arith.subf %8, %11 : vector<2x8x8xf32>
    %13 = math.exp %12 : vector<2x8x8xf32>
    %cst_10 = arith.constant dense<0.000000e+00> : vector<2x8xf32>
    %14 = vector.multi_reduction <add>, %13, %cst_10 [2] : vector<2x8x8xf32> to vector<2x8xf32>
    %15 = vector.shape_cast %14 : vector<2x8xf32> to vector<2x8x1xf32>
    %16 = tpu.reciprocal %15 : vector<2x8x1xf32> -> vector<2x8x1xf32>
    %17 = vector.broadcast %16 : vector<2x8x1xf32> to vector<2x8x8xf32>
    %18 = arith.mulf %13, %17 : vector<2x8x8xf32>
    %c0_11 = arith.constant 0 : index
    %c0_12 = arith.constant 0 : index
    %c0_13 = arith.constant 0 : index
    %19 = vector.load %arg7[%c0_11, %c0_12, %c0_13] : memref<2x8x8xf32, #tpu.memory_space<vmem>>, vector<2x8x8xf32>
    tpu.vector_store %arg7[%c0_11, %c0_12, %c0_13], %18 {strides = array<i32>} : memref<2x8x8xf32, #tpu.memory_space<vmem>>, vector<2x8x8xf32>,
    %c0_14 = arith.constant 0 : index
    %c0_15 = arith.constant 0 : index
    %c0_16 = arith.constant 0 : index
    %20 = vector.load %arg5[%c0_14, %c0_15, %c0_16] : memref<2x8x16xf32, #tpu.memory_space<vmem>>, vector<2x8x16xf32>
    "tpu.trace_start"() <{level = 10 : i32, message = "bqk,bkd->bqd"}> : () -> ()
    %cst_17 = arith.constant dense<0.000000e+00> : vector<2x8x16xf32>
    %21 = tpu.matmul %18, %20, %cst_17 {dimension_numbers = #tpu.dot_dimension_numbers<[2], [1], [1], [2], [0, 0, 0, 1, 1, 2], [0], [0]>} : vector<2x8x8xf32>, vector<2x8x16xf32>, vector<2x8x16xf32> -> vector<2x8x16xf32>
    "tpu.trace_stop"() : () -> ()
    %c0_18 = arith.constant 0 : index
    %c0_19 = arith.constant 0 : index
    %c0_20 = arith.constant 0 : index
    %22 = vector.load %arg6[%c0_18, %c0_19, %c0_20] : memref<2x8x16xf32, #tpu.memory_space<vmem>>, vector<2x8x16xf32>
    tpu.vector_store %arg6[%c0_18, %c0_19, %c0_20], %21 {strides = array<i32>} : memref<2x8x16xf32, #tpu.memory_space<vmem>>, vector<2x8x16xf32>,
    return
  }
  func.func @transform_0(%arg0: i32, %arg1: i32) -> (i32, i32, i32) {
    %c0_i32 = arith.constant 0 : i32
    %c0_i32_0 = arith.constant 0 : i32
    %c0_i32_1 = arith.constant 0 : i32
    return %c0_i32, %arg1, %c0_i32_0 : i32, i32, i32
  }
  func.func @transform_1(%arg0: i32, %arg1: i32) -> (i32, i32, i32) {
    %c0_i32 = arith.constant 0 : i32
    %c0_i32_0 = arith.constant 0 : i32
    return %arg0, %arg1, %c0_i32 : i32, i32, i32
  }
  func.func @transform_2(%arg0: i32, %arg1: i32) -> (i32, i32, i32) {
    %c0_i32 = arith.constant 0 : i32
    %c0_i32_0 = arith.constant 0 : i32
    %c0_i32_1 = arith.constant 0 : i32
    return %arg0, %c0_i32, %c0_i32_0 : i32, i32, i32
  }
  func.func @transform_3(%arg0: i32, %arg1: i32) -> (i32, i32, i32) {
    %c0_i32 = arith.constant 0 : i32
    %c0_i32_0 = arith.constant 0 : i32
    %c0_i32_1 = arith.constant 0 : i32
    return %arg0, %c0_i32, %c0_i32_0 : i32, i32, i32
  }
  func.func @transform_4(%arg0: i32, %arg1: i32) -> (i32, i32, i32) {
    %c0_i32 = arith.constant 0 : i32
    %c0_i32_0 = arith.constant 0 : i32
    return %arg0, %arg1, %c0_i32 : i32, i32, i32
  }
  func.func @transform_5(%arg0: i32, %arg1: i32) -> (i32, i32, i32) {
    %c0_i32 = arith.constant 0 : i32
    %c0_i32_0 = arith.constant 0 : i32
    return %arg0, %arg1, %c0_i32 : i32, i32, i32
  }
}

</mosaic_0001>

<llo_original>
// kernel: tpu_custom_call.1
$region0: #{tpu_custom_call.1}
  #allocation0 [shape = 'u32[]', space=smem, size = 0x4, offset = 0x4, fixed_abs, tag = 'smem constant byte address 0x4 - core index']
  #allocation1 [shape = 'u32[144,128]{1,0:T(1,128)}', space=vmem, size = 0x12000, scoped, tag = 'internal scratch']
  %s0 = inlined_call_operand.hbm [shape: bf16[1,8,8], index: 0, kind: input, shape index: {}]
  %s1 = inlined_call_operand.hbm [shape: f32[4,8,16], index: 1, kind: input, shape index: {}]
  %s2 = inlined_call_operand.hbm [shape: f32[4,8,16], index: 2, kind: input, shape index: {}]
  %s3 = inlined_call_operand.hbm [shape: f32[4,8,16], index: 3, kind: input, shape index: {}]
  %s4 = inlined_call_operand.hbm [shape: f32[4,8,16], index: 4, kind: output, shape index: {0}]
  %s5 = inlined_call_operand.hbm [shape: f32[4,8,8], index: 5, kind: output, shape index: {1}]
  %6 = xla_tuple %s4, %s5
  %s7 = sld [smem:[#allocation0]]
  $region73: #{tpu_custom_call.1} parent=0
    _
  %s9 = ssub.s32 1, %s7
  %s10 = scalar_select 0, %s9, %s7
  $region1: #{tpu_custom_call.1} parent=0
    #allocation2 [shape = 'u8[2048]{0}', space=vmem, size = 0x800, scoped, tag = 'input window, operand 0, single buffered']
    #allocation3 [shape = 's32[2]{0}', space=sflag, size = 0x8, scoped, tag = 'scoped memory for tpu_custom_call.1']
    #allocation4 [shape = 's32[2]{0}', space=sflag, size = 0x8, scoped, tag = 'scoped memory for tpu_custom_call.1']
    #allocation5 [shape = 'u8[16384]{0}', space=vmem, size = 0x4000, scoped, tag = 'input window, operand 1']
    #allocation6 [shape = 's32[2]{0}', space=sflag, size = 0x8, scoped, tag = 'scoped memory for tpu_custom_call.1']
    #allocation7 [shape = 'u8[16384]{0}', space=vmem, size = 0x4000, scoped, tag = 'input window, operand 2']
    #allocation8 [shape = 'u8[16384]{0}', space=vmem, size = 0x4000, scoped, tag = 'input window, operand 3']
    #allocation9 [shape = 's32[2]{0}', space=sflag, size = 0x8, scoped, tag = 'scoped memory for tpu_custom_call.1']
    #allocation10 [shape = 'u8[16384]{0}', space=vmem, size = 0x4000, scoped, tag = 'output window, operand 0']
    #allocation11 [shape = 'u8[16384]{0}', space=vmem, size = 0x4000, scoped, tag = 'output window, operand 1']
    #allocation12 [shape = 's32[2]{0}', space=sflag, size = 0x8, scoped, tag = 'scoped memory for tpu_custom_call.1']
    %11 = vsyncpa [#allocation3], 0
    %12 = vsyncpa [#allocation6], 0
    %s13 = scalar_lea.sflag [#allocation6], 1
    %14 = vsyncpa %s13, 0
    %15 = vsyncpa [#allocation9], 0
    %s16 = scalar_lea.sflag [#allocation9], 1
    %17 = vsyncpa %s16, 0
    %18 = vsyncpa [#allocation4], 0
    %s19 = scalar_lea.sflag [#allocation4], 1
    %20 = vsyncpa %s19, 0
    %21 = vsyncpa [#allocation12], 0
    %s22 = scalar_lea.sflag [#allocation12], 1
    %23 = vsyncpa %s22, 0
    loop: start=0, step=1, limit=4
    $region2: #{tpu_custom_call.1} parent=1 // loop_pre_header
      _
    $region3: #{tpu_custom_call.1} parent=1 // loop_header
      %s25 = sphi 0, %s29
      %p26 = scmp.ge.s32.totalorder %s25, 4
      %s32 = sphi 0, %s44
      %s33 = sphi 0, %s40
      %s34 = sphi 0, %s32
      %s35 = sphi 0, %s33
      %s36 = sphi 0, %s34
      %s37 = sphi 0, %s35
      %s47 = sphi 0, %s49
      %s50 = sphi 0, %s47
      %s51 = sphi 0, %s50
      %s67 = sphi 0, %s51
      %s75 = sphi 0, %s77
      %s78 = sphi 0, %s75
      %s79 = sphi 0, %s78
      %s95 = sphi 0, %s79
      %s101 = sphi 0, %s103
      %s104 = sphi 0, %s101
      %s105 = sphi 0, %s104
      %s121 = sphi 0, %s105
      %s127 = sphi 0, %s129
      %s130 = sphi 0, %s127
      %s131 = sphi 0, %s130
      %s147 = sphi 0, %s131
      %s155 = sphi 0, %s157
      %s158 = sphi 0, %s155
      %s159 = sphi 0, %s158
      %s175 = sphi 0, %s159
      %s183 = sphi 0, %s185
      %s186 = sphi 0, %s183
      %s187 = sphi 0, %s186
      %s203 = sphi 0, %s187
    $region4: #{tpu_custom_call.1} parent=1 // loop_header_branch
      %28 = sbr.rel (%p26) target = $region8
    $region5: #{tpu_custom_call.1} parent=1 // loop_body
      %s30 = ssub.s32 %s25, 1
      %s31 = ssub.s32 %s25, 2
      %s38 = sadd.s32 1, %s33
      %p39 = scmp.ge.s32.totalorder %s38, 1
      %s40 = scalar_select %p39, 0, %s38
      %s41 = sadd.s32 1, %s32
      %s42 = scalar_select %p39, %s41, %s32
      %p43 = scmp.ge.s32.totalorder %s42, 2
      %s44 = scalar_select %p43, 0, %s42
      %s45 = ssub.s32 %s33, %s40
      %p46 = scmp.eq.s32.totalorder %s45, 0
      %s48 = sadd.s32 %s47, 1
      %s49 = scalar_select %p46, %s47, %s48
      %p52 = pneg %p46
      %p53 = scmp.eq.s32.totalorder %s25, 1
      %p54 = por %p52, %p53
      %p55 = scmp.ne.s32.totalorder %s47, %s50
      %p56 = scmp.eq.s32.totalorder %s25, 0
      %p57 = por %p55, %p56
      %p58 = scmp.ne.s32.totalorder %s47, %s50
      %p59 = scmp.eq.s32.totalorder %s30, 1
      %p60 = por %p58, %p59
      %p61 = scmp.ne.s32.totalorder %s50, %s51
      %p62 = scmp.eq.s32.totalorder %s30, 0
      %p63 = por %p61, %p62
      %p64 = scmp.ne.s32.totalorder %s50, %s51
      %p65 = scmp.eq.s32.totalorder %s31, 1
      %p66 = por %p64, %p65
      %p68 = scmp.ne.s32.totalorder %s51, %s67
      %p69 = scmp.eq.s32.totalorder %s31, 0
      %p70 = por %p68, %p69
      %s71 = ssub.s32 %s32, %s44
      %s72 = ssub.s32 %s33, %s40
      %s73 = sor.u32 %s71, %s72
      %p74 = scmp.eq.s32.totalorder %s73, 0
      %s76 = sadd.s32 %s75, 1
      %s77 = scalar_select %p74, %s75, %s76
      %p80 = pneg %p74
      %p81 = scmp.eq.s32.totalorder %s25, 1
      %p82 = por %p80, %p81
      %p83 = scmp.ne.s32.totalorder %s75, %s78
      %p84 = scmp.eq.s32.totalorder %s25, 0
      %p85 = por %p83, %p84
      %p86 = scmp.ne.s32.totalorder %s75, %s78
      %p87 = scmp.eq.s32.totalorder %s30, 1
      %p88 = por %p86, %p87
      %p89 = scmp.ne.s32.totalorder %s78, %s79
      %p90 = scmp.eq.s32.totalorder %s30, 0
      %p91 = por %p89, %p90
      %p92 = scmp.ne.s32.totalorder %s78, %s79
      %p93 = scmp.eq.s32.totalorder %s31, 1
      %p94 = por %p92, %p93
      %p96 = scmp.ne.s32.totalorder %s79, %s95
      %p97 = scmp.eq.s32.totalorder %s31, 0
      %p98 = por %p96, %p97
      %s99 = ssub.s32 %s32, %s44
      %p100 = scmp.eq.s32.totalorder %s99, 0
      %s102 = sadd.s32 %s101, 1
      %s103 = scalar_select %p100, %s101, %s102
      %p106 = pneg %p100
      %p107 = scmp.eq.s32.totalorder %s25, 1
      %p108 = por %p106, %p107
      %p109 = scmp.ne.s32.totalorder %s101, %s104
      %p110 = scmp.eq.s32.totalorder %s25, 0
      %p111 = por %p109, %p110
      %p112 = scmp.ne.s32.totalorder %s101, %s104
      %p113 = scmp.eq.s32.totalorder %s30, 1
      %p114 = por %p112, %p113
      %p115 = scmp.ne.s32.totalorder %s104, %s105
      %p116 = scmp.eq.s32.totalorder %s30, 0
      %p117 = por %p115, %p116
      %p118 = scmp.ne.s32.totalorder %s104, %s105
      %p119 = scmp.eq.s32.totalorder %s31, 1
      %p120 = por %p118, %p119
      %p122 = scmp.ne.s32.totalorder %s105, %s121
      %p123 = scmp.eq.s32.totalorder %s31, 0
      %p124 = por %p122, %p123
      %s125 = ssub.s32 %s32, %s44
      %p126 = scmp.eq.s32.totalorder %s125, 0
      %s128 = sadd.s32 %s127, 1
      %s129 = scalar_select %p126, %s127, %s128
      %p132 = pneg %p126
      %p133 = scmp.eq.s32.totalorder %s25, 1
      %p134 = por %p132, %p133
      %p135 = scmp.ne.s32.totalorder %s127, %s130
      %p136 = scmp.eq.s32.totalorder %s25, 0
      %p137 = por %p135, %p136
      %p138 = scmp.ne.s32.totalorder %s127, %s130
      %p139 = scmp.eq.s32.totalorder %s30, 1
      %p140 = por %p138, %p139
      %p141 = scmp.ne.s32.totalorder %s130, %s131
      %p142 = scmp.eq.s32.totalorder %s30, 0
      %p143 = por %p141, %p142
      %p144 = scmp.ne.s32.totalorder %s130, %s131
      %p145 = scmp.eq.s32.totalorder %s31, 1
      %p146 = por %p144, %p145
      %p148 = scmp.ne.s32.totalorder %s131, %s147
      %p149 = scmp.eq.s32.totalorder %s31, 0
      %p150 = por %p148, %p149
      %s151 = ssub.s32 %s32, %s44
      %s152 = ssub.s32 %s33, %s40
      %s153 = sor.u32 %s151, %s152
      %p154 = scmp.eq.s32.totalorder %s153, 0
      %s156 = sadd.s32 %s155, 1
      %s157 = scalar_select %p154, %s155, %s156
      %p160 = pneg %p154
      %p161 = scmp.eq.s32.totalorder %s25, 1
      %p162 = por %p160, %p161
      %p163 = scmp.ne.s32.totalorder %s155, %s158
      %p164 = scmp.eq.s32.totalorder %s25, 0
      %p165 = por %p163, %p164
      %p166 = scmp.ne.s32.totalorder %s155, %s158
      %p167 = scmp.eq.s32.totalorder %s30, 1
      %p168 = por %p166, %p167
      %p169 = scmp.ne.s32.totalorder %s158, %s159
      %p170 = scmp.eq.s32.totalorder %s30, 0
      %p171 = por %p169, %p170
      %p172 = scmp.ne.s32.totalorder %s158, %s159
      %p173 = scmp.eq.s32.totalorder %s31, 1
      %p174 = por %p172, %p173
      %p176 = scmp.ne.s32.totalorder %s159, %s175
      %p177 = scmp.eq.s32.totalorder %s31, 0
      %p178 = por %p176, %p177
      %s179 = ssub.s32 %s32, %s44
      %s180 = ssub.s32 %s33, %s40
      %s181 = sor.u32 %s179, %s180
      %p182 = scmp.eq.s32.totalorder %s181, 0
      %s184 = sadd.s32 %s183, 1
      %s185 = scalar_select %p182, %s183, %s184
      %p188 = pneg %p182
      %p189 = scmp.eq.s32.totalorder %s25, 1
      %p190 = por %p188, %p189
      %p191 = scmp.ne.s32.totalorder %s183, %s186
      %p192 = scmp.eq.s32.totalorder %s25, 0
      %p193 = por %p191, %p192
      %p194 = scmp.ne.s32.totalorder %s183, %s186
      %p195 = scmp.eq.s32.totalorder %s30, 1
      %p196 = por %p194, %p195
      %p197 = scmp.ne.s32.totalorder %s186, %s187
      %p198 = scmp.eq.s32.totalorder %s30, 0
      %p199 = por %p197, %p198
      %p200 = scmp.ne.s32.totalorder %s186, %s187
      %p201 = scmp.eq.s32.totalorder %s31, 1
      %p202 = por %p200, %p201
      %p204 = scmp.ne.s32.totalorder %s187, %s203
      %p205 = scmp.eq.s32.totalorder %s31, 0
      %p206 = por %p204, %p205
      %p207 = scmp.le.s32.totalorder 1, %s25
      %p208 = scmp.lt.s32.totalorder %s25, 3
      %p209 = pnand %p207, %p208
      %p210 = pneg %p209
      // Predicated region
      $region9: #{tpu_custom_call.1} parent=5 // pred_check
        _
      $region10: #{tpu_custom_call.1} parent=5 // pred_check_branch
        %212 = sbr.rel (%p209) target = $region12
      $region11: #{tpu_custom_call.1} parent=5 // pred_region
        %s213 = ssub.s32 %s25, 1
        // Predicated region
        $region13: #{tpu_custom_call.1} parent=11 // pred_check
          %p214 = pneg %p63
        $region14: #{tpu_custom_call.1} parent=11 // pred_check_branch
          %216 = sbr.rel (%p214) target = $region16
        $region15: #{tpu_custom_call.1} parent=11 // pred_region
          %s218 = ssub.s32 64, 64
          %219 = vsyncadd [#allocation3], %s218
          %s220 = smul.addr %s35, 64
          %s221 = scalar_lea.hbm %s0, %s220
          %s223 = sshll.u32 [#allocation2], 4
          %s224 = int_to_ptr.vmem [resolvable:$true] %s223
          %226 = dma.hbm_to_vmem [thread:$0]  %s221, 64, %s224, [#allocation3]
        $region16: #{tpu_custom_call.1} parent=11 // pred_fallthru
          _
      $region12: #{tpu_custom_call.1} parent=5 // pred_fallthru
        _
      %p227 = scmp.lt.s32.totalorder %s25, 2
      // Predicated region
      $region17: #{tpu_custom_call.1} parent=5 // pred_check
        %p228 = pneg %p227
      $region18: #{tpu_custom_call.1} parent=5 // pred_check_branch
        %230 = sbr.rel (%p228) target = $region20
      $region19: #{tpu_custom_call.1} parent=5 // pred_region
        // Predicated region
        $region21: #{tpu_custom_call.1} parent=19 // pred_check
          %p231 = pneg %p85
        $region22: #{tpu_custom_call.1} parent=19 // pred_check_branch
          %233 = sbr.rel (%p231) target = $region24
        $region23: #{tpu_custom_call.1} parent=19 // pred_region
          %s234 = sand.u32 %s25, 1
          %s235 = scalar_lea.sflag [#allocation6], %s234
          %s236 = sand.u32 %s75, 1
          %s237 = smul.addr %s236, 16
          %s238 = scalar_lea.vmem [#allocation5], %s237
          %s239 = smul.u32 2, %s32
          %s241 = ssub.s32 256, 256
          %242 = vsyncadd %s235, %s241
          %s243 = sadd.s32 %s33, %s239
          %s244 = smul.addr %s243, 128
          %s245 = scalar_lea.hbm %s1, %s244
          %s246 = sshll.u32 %s238, 4
          %s247 = int_to_ptr.vmem [resolvable:$true] %s246
          %252 = dma.hbm_to_vmem [thread:$0]  %s245, 256, %s247, %s235, 128, 128, 8
        $region24: #{tpu_custom_call.1} parent=19 // pred_fallthru
          _
        // Predicated region
        $region25: #{tpu_custom_call.1} parent=19 // pred_check
          %p253 = pneg %p111
        $region26: #{tpu_custom_call.1} parent=19 // pred_check_branch
          %255 = sbr.rel (%p253) target = $region28
        $region27: #{tpu_custom_call.1} parent=19 // pred_region
          %s256 = sand.u32 %s25, 1
          %s257 = scalar_lea.sflag [#allocation6], %s256
          %s258 = sand.u32 %s101, 1
          %s259 = smul.addr %s258, 16
          %s260 = scalar_lea.vmem [#allocation7], %s259
          %s261 = smul.u32 2, %s32
          %s263 = ssub.s32 256, 256
          %264 = vsyncadd %s257, %s263
          %s265 = smul.addr %s261, 128
          %s266 = scalar_lea.hbm %s2, %s265
          %s267 = sshll.u32 %s260, 4
          %s268 = int_to_ptr.vmem [resolvable:$true] %s267
          %273 = dma.hbm_to_vmem [thread:$0]  %s266, 256, %s268, %s257, 128, 128, 8
        $region28: #{tpu_custom_call.1} parent=19 // pred_fallthru
          _
        // Predicated region
        $region29: #{tpu_custom_call.1} parent=19 // pred_check
          %p274 = pneg %p137
        $region30: #{tpu_custom_call.1} parent=19 // pred_check_branch
          %276 = sbr.rel (%p274) target = $region32
        $region31: #{tpu_custom_call.1} parent=19 // pred_region
          %s277 = sand.u32 %s127, 1
          %s278 = scalar_lea.sflag [#allocation9], %s277
          %s279 = sand.u32 %s127, 1
          %s280 = smul.addr %s279, 16
          %s281 = scalar_lea.vmem [#allocation8], %s280
          %s282 = smul.u32 2, %s32
          %s284 = ssub.s32 256, 256
          %285 = vsyncadd %s278, %s284
          %s286 = smul.addr %s282, 128
          %s287 = scalar_lea.hbm %s3, %s286
          %s288 = sshll.u32 %s281, 4
          %s289 = int_to_ptr.vmem [resolvable:$true] %s288
          %294 = dma.hbm_to_vmem [thread:$0]  %s287, 256, %s289, %s278, 128, 128, 8
        $region32: #{tpu_custom_call.1} parent=19 // pred_fallthru
          _
      $region20: #{tpu_custom_call.1} parent=5 // pred_fallthru
        _
      %p295 = scmp.le.s32.totalorder 1, %s25
      %p296 = scmp.lt.s32.totalorder %s25, 3
      %p297 = pnand %p295, %p296
      %p298 = pneg %p297
      // Predicated region
      $region33: #{tpu_custom_call.1} parent=5 // pred_check
        _
      $region34: #{tpu_custom_call.1} parent=5 // pred_check_branch
        %300 = sbr.rel (%p297) target = $region36
      $region35: #{tpu_custom_call.1} parent=5 // pred_region
        %s301 = ssub.s32 %s25, 1
        // Predicated region
        $region37: #{tpu_custom_call.1} parent=35 // pred_check
          %p302 = pneg %p63
        $region38: #{tpu_custom_call.1} parent=35 // pred_check_branch
          %304 = sbr.rel (%p302) target = $region40
        $region39: #{tpu_custom_call.1} parent=35 // pred_region
          %305 = dma.done [#allocation3], 64
        $region40: #{tpu_custom_call.1} parent=35 // pred_fallthru
          _
        %s306 = sand.u32 %s30, 1
        %s307 = scalar_lea.sflag [#allocation6], %s306
        %s308 = sand.u32 %s78, 1
        %s309 = smul.addr %s308, 16
        %s310 = scalar_lea.vmem [#allocation5], %s309
        // Predicated region
        $region41: #{tpu_custom_call.1} parent=35 // pred_check
          %p311 = pneg %p91
        $region42: #{tpu_custom_call.1} parent=35 // pred_check_branch
          %313 = sbr.rel (%p311) target = $region44
        $region43: #{tpu_custom_call.1} parent=35 // pred_region
          %314 = dma.done %s307, 256
        $region44: #{tpu_custom_call.1} parent=35 // pred_fallthru
          _
        %s315 = sand.u32 %s30, 1
        %s316 = scalar_lea.sflag [#allocation6], %s315
        %s317 = sand.u32 %s104, 1
        %s318 = smul.addr %s317, 16
        %s319 = scalar_lea.vmem [#allocation7], %s318
        // Predicated region
        $region45: #{tpu_custom_call.1} parent=35 // pred_check
          %p320 = pneg %p117
        $region46: #{tpu_custom_call.1} parent=35 // pred_check_branch
          %322 = sbr.rel (%p320) target = $region48
        $region47: #{tpu_custom_call.1} parent=35 // pred_region
          %323 = dma.done %s316, 256
        $region48: #{tpu_custom_call.1} parent=35 // pred_fallthru
          _
        %s324 = sand.u32 %s130, 1
        %s325 = scalar_lea.sflag [#allocation9], %s324
        %s326 = sand.u32 %s130, 1
        %s327 = smul.addr %s326, 16
        %s328 = scalar_lea.vmem [#allocation8], %s327
        // Predicated region
        $region49: #{tpu_custom_call.1} parent=35 // pred_check
          %p329 = pneg %p143
        $region50: #{tpu_custom_call.1} parent=35 // pred_check_branch
          %331 = sbr.rel (%p329) target = $region52
        $region51: #{tpu_custom_call.1} parent=35 // pred_region
          %332 = dma.done %s325, 256
        $region52: #{tpu_custom_call.1} parent=35 // pred_fallthru
          _
        %p333 = pneg %p63
        %p334 = pneg %p60
        %s335 = sand.u32 %s30, 1
        %s336 = scalar_lea.sflag [#allocation6], %s335
        %s337 = sand.u32 %s78, 1
        %s338 = smul.addr %s337, 16
        %s339 = scalar_lea.vmem [#allocation5], %s338
        %p340 = pneg %p91
        %p341 = pneg %p88
        %s342 = sand.u32 %s30, 1
        %s343 = scalar_lea.sflag [#allocation6], %s342
        %s344 = sand.u32 %s104, 1
        %s345 = smul.addr %s344, 16
        %s346 = scalar_lea.vmem [#allocation7], %s345
        %p347 = pneg %p117
        %p348 = pneg %p114
        %s349 = sand.u32 %s130, 1
        %s350 = scalar_lea.sflag [#allocation9], %s349
        %s351 = sand.u32 %s130, 1
        %s352 = smul.addr %s351, 16
        %s353 = scalar_lea.vmem [#allocation8], %s352
        %p354 = pneg %p143
        %p355 = pneg %p140
        %p356 = pneg %p171
        %p357 = pneg %p168
        %s358 = sand.u32 %s158, 1
        %s359 = scalar_lea.sflag [#allocation4], %s358
        %s360 = sand.u32 %s158, 1
        %s361 = smul.addr %s360, 16
        %s362 = scalar_lea.vmem [#allocation10], %s361
        %p363 = pneg %p199
        %p364 = pneg %p196
        %s365 = sand.u32 %s186, 1
        %s366 = scalar_lea.sflag [#allocation12], %s365
        %s367 = sand.u32 %s186, 1
        %s368 = smul.addr %s367, 16
        %s369 = scalar_lea.vmem [#allocation11], %s368
        %s370 = smul.u32 2, %s34
        %s371 = smul.u32 2, %s34
        %s372 = smul.u32 2, %s34
        %s373 = smul.u32 2, %s34
        %s374 = smul.u32 2, %s34
        %v375 = vld [vmem:[%s310] sm:$0xff]
        %v376 = vld [vmem:[%s310 + $0x8] sm:$0xff]
        %v377 = vld [vmem:[%s319] sm:$0xff]
        %v378 = vld [vmem:[%s319 + $0x8] sm:$0xff]
        %vm379 = vcmask 130048
        %v381 = vsel %vm379, %v375, 0
        %v384 = vsel %vm379, %v377, 0
        %386 = vmatprep.subr.mxu0 0.0
        %387 = vmatpush1.xpose.msra.mxu0 %v384
        %388 = vmatprep.subr.mxu0 0.0
        %389 = vmatpush1.xpose.msra.mxu0 0.0
        %390 = vmatprep.subr.mxu0 0.0
        %391 = vmatpush1.xpose.msra.mxu0 0.0
        %392 = vmatprep.subr.mxu0 0.0
        %393 = vmatpush1.xpose.msra.mxu0 0.0
        %394 = vmatprep.subr.mxu0 0.0
        %395 = vmatpush1.xpose.msra.mxu0 0.0
        %396 = vmatprep.subr.mxu0 0.0
        %397 = vmatpush1.xpose.msra.mxu0 0.0
        %398 = vmatprep.subr.mxu0 0.0
        %399 = vmatpush1.xpose.msra.mxu0 0.0
        %400 = vmatprep.subr.mxu0 0.0
        %401 = vmatpush1.xpose.msra.mxu0 0.0
        %402 = vmatprep.subr.mxu0 0.0
        %403 = vmatpush1.xpose.msra.mxu0 0.0
        %404 = vmatprep.subr.mxu0 0.0
        %405 = vmatpush1.xpose.msra.mxu0 0.0
        %406 = vmatprep.subr.mxu0 0.0
        %407 = vmatpush1.xpose.msra.mxu0 0.0
        %408 = vmatprep.subr.mxu0 0.0
        %409 = vmatpush1.xpose.msra.mxu0 0.0
        %410 = vmatprep.subr.mxu0 0.0
        %411 = vmatpush1.xpose.msra.mxu0 0.0
        %412 = vmatprep.subr.mxu0 0.0
        %413 = vmatpush1.xpose.msra.mxu0 0.0
        %414 = vmatprep.subr.mxu0 0.0
        %415 = vmatpush1.xpose.msra.mxu0 0.0
        %416 = vmatprep.subr.mxu0 0.0
        %417 = vmatpush1.xpose.msra.mxu0 0.0
        %418 = vmatprep.subr.mxu0 0.0
        %419 = vmatpush1.xpose.msra.mxu0 0.0
        %420 = vmatprep.subr.mxu0 0.0
        %421 = vmatpush1.xpose.msra.mxu0 0.0
        %422 = vmatprep.subr.mxu0 0.0
        %423 = vmatpush1.xpose.msra.mxu0 0.0
        %424 = vmatprep.subr.mxu0 0.0
        %425 = vmatpush1.xpose.msra.mxu0 0.0
        %426 = vmatprep.subr.mxu0 0.0
        %427 = vmatpush1.xpose.msra.mxu0 0.0
        %428 = vmatprep.subr.mxu0 0.0
        %429 = vmatpush1.xpose.msra.mxu0 0.0
        %430 = vmatprep.subr.mxu0 0.0
        %431 = vmatpush1.xpose.msra.mxu0 0.0
        %432 = vmatprep.subr.mxu0 0.0
        %433 = vmatpush1.xpose.msra.mxu0 0.0
        %434 = vmatprep.subr.mxu0 0.0
        %435 = vmatpush1.xpose.msra.mxu0 0.0
        %436 = vmatprep.subr.mxu0 0.0
        %437 = vmatpush1.xpose.msra.mxu0 0.0
        %438 = vmatprep.subr.mxu0 0.0
        %439 = vmatpush1.xpose.msra.mxu0 0.0
        %440 = vmatprep.subr.mxu0 0.0
        %441 = vmatpush1.xpose.msra.mxu0 0.0
        %442 = vmatprep.subr.mxu0 0.0
        %443 = vmatpush1.xpose.msra.mxu0 0.0
        %444 = vmatprep.subr.mxu0 0.0
        %445 = vmatpush1.xpose.msra.mxu0 0.0
        %446 = vmatprep.subr.mxu0 0.0
        %447 = vmatpush1.xpose.msra.mxu0 0.0
        %448 = vmatprep.subr.mxu0 0.0
        %449 = vmatpush1.xpose.msra.mxu0 0.0
        %450 = vmatprep.mubr.f32.mxu0 0.0
        %451 = vmatmul.mubr.f32.gmra.mrb[0].mxu0 %v381
        %v452 = vpop.f32.mrb[0].mxu0
        %v453 = vadd.f32 0.0, %v452
        %v454 = vpop.f32.mrb[0].mxu0
        %455 = vdwg.mxu0
        %v457 = vsel %vm379, %v376, 0
        %v460 = vsel %vm379, %v378, 0
        %462 = vmatprep.subr.mxu0 0.0
        %463 = vmatpush1.xpose.msra.mxu0 %v460
        %464 = vmatprep.subr.mxu0 0.0
        %465 = vmatpush1.xpose.msra.mxu0 0.0
        %466 = vmatprep.subr.mxu0 0.0
        %467 = vmatpush1.xpose.msra.mxu0 0.0
        %468 = vmatprep.subr.mxu0 0.0
        %469 = vmatpush1.xpose.msra.mxu0 0.0
        %470 = vmatprep.subr.mxu0 0.0
        %471 = vmatpush1.xpose.msra.mxu0 0.0
        %472 = vmatprep.subr.mxu0 0.0
        %473 = vmatpush1.xpose.msra.mxu0 0.0
        %474 = vmatprep.subr.mxu0 0.0
        %475 = vmatpush1.xpose.msra.mxu0 0.0
        %476 = vmatprep.subr.mxu0 0.0
        %477 = vmatpush1.xpose.msra.mxu0 0.0
        %478 = vmatprep.subr.mxu0 0.0
        %479 = vmatpush1.xpose.msra.mxu0 0.0
        %480 = vmatprep.subr.mxu0 0.0
        %481 = vmatpush1.xpose.msra.mxu0 0.0
        %482 = vmatprep.subr.mxu0 0.0
        %483 = vmatpush1.xpose.msra.mxu0 0.0
        %484 = vmatprep.subr.mxu0 0.0
        %485 = vmatpush1.xpose.msra.mxu0 0.0
        %486 = vmatprep.subr.mxu0 0.0
        %487 = vmatpush1.xpose.msra.mxu0 0.0
        %488 = vmatprep.subr.mxu0 0.0
        %489 = vmatpush1.xpose.msra.mxu0 0.0
        %490 = vmatprep.subr.mxu0 0.0
        %491 = vmatpush1.xpose.msra.mxu0 0.0
        %492 = vmatprep.subr.mxu0 0.0
        %493 = vmatpush1.xpose.msra.mxu0 0.0
        %494 = vmatprep.subr.mxu0 0.0
        %495 = vmatpush1.xpose.msra.mxu0 0.0
        %496 = vmatprep.subr.mxu0 0.0
        %497 = vmatpush1.xpose.msra.mxu0 0.0
        %498 = vmatprep.subr.mxu0 0.0
        %499 = vmatpush1.xpose.msra.mxu0 0.0
        %500 = vmatprep.subr.mxu0 0.0
        %501 = vmatpush1.xpose.msra.mxu0 0.0
        %502 = vmatprep.subr.mxu0 0.0
        %503 = vmatpush1.xpose.msra.mxu0 0.0
        %504 = vmatprep.subr.mxu0 0.0
        %505 = vmatpush1.xpose.msra.mxu0 0.0
        %506 = vmatprep.subr.mxu0 0.0
        %507 = vmatpush1.xpose.msra.mxu0 0.0
        %508 = vmatprep.subr.mxu0 0.0
        %509 = vmatpush1.xpose.msra.mxu0 0.0
        %510 = vmatprep.subr.mxu0 0.0
        %511 = vmatpush1.xpose.msra.mxu0 0.0
        %512 = vmatprep.subr.mxu0 0.0
        %513 = vmatpush1.xpose.msra.mxu0 0.0
        %514 = vmatprep.subr.mxu0 0.0
        %515 = vmatpush1.xpose.msra.mxu0 0.0
        %516 = vmatprep.subr.mxu0 0.0
        %517 = vmatpush1.xpose.msra.mxu0 0.0
        %518 = vmatprep.subr.mxu0 0.0
        %519 = vmatpush1.xpose.msra.mxu0 0.0
        %520 = vmatprep.subr.mxu0 0.0
        %521 = vmatpush1.xpose.msra.mxu0 0.0
        %522 = vmatprep.subr.mxu0 0.0
        %523 = vmatpush1.xpose.msra.mxu0 0.0
        %524 = vmatprep.subr.mxu0 0.0
        %525 = vmatpush1.xpose.msra.mxu0 0.0
        %526 = vmatprep.mubr.f32.mxu0 0.0
        %527 = vmatmul.mubr.f32.gmra.mrb[0].mxu0 %v457
        %v528 = vpop.f32.mrb[0].mxu0
        %v529 = vadd.f32 0.0, %v528
        %v530 = vpop.f32.mrb[0].mxu0
        %531 = vdwg.mxu0
        %v532 = vmul.f32 %v453, 0.25
        %v533 = vmul.f32 %v529, 0.25
        %v534 = vld [vmem:[#allocation2] sm:$0xf]
        %v535 = vunpack.c.l.bf16 %v534
        %v536 = vadd.f32 %v532, %v535
        %v537 = vadd.f32 %v533, %v535
        %vm538 = vcmask 64512
        %v539 = vsel %vm538, %v536, -inf
        %540 = vmax.xlane.f32.xlu0 %v539
        %v541 = vpop.xlane.xlu0 %540
        %v542 = vsel %vm538, %v537, -inf
        %543 = vmax.xlane.f32.xlu0 %v542
        %v544 = vpop.xlane.xlu0 %543
        %v545 = vsub.f32 %v536, %v541
        %v546 = vsub.f32 %v537, %v544
        %v547 = vmul.f32 %v545, 1.442695
        %v548 = vpow.pop %v547
        %v549 = vmul.f32 %v546, 1.442695
        %v550 = vpow.pop %v549
        %v551 = vsel %vm538, %v548, 0.0
        %552 = vadd.xlane.f32.xlu0 %v551
        %v553 = vpop.xlane.xlu0 %552
        %v554 = vsel %vm538, %v550, 0.0
        %555 = vadd.xlane.f32.xlu0 %v554
        %v556 = vpop.xlane.xlu0 %555
        %v557 = vrcp.pop %v553
        %v558 = vrcp.pop %v556
        %v559 = vmul.f32 %v548, %v557
        %v560 = vmul.f32 %v550, %v558
        %561 = vst.msk [vmem:[%s369] sm:$0xff] %vm538, %v559
        %562 = vst.msk [vmem:[%s369 + $0x8] sm:$0xff] %vm538, %v560
        %v563 = vld [vmem:[%s328] sm:$0xff]
        %v564 = vld [vmem:[%s328 + $0x8] sm:$0xff]
        %v566 = vsel %vm538, %v559, 0
        %568 = vmatprep.subr.mxu0 0.0
        %569 = vmatpush1.msra.mxu0 %v563
        %570 = vmatprep.subr.mxu0 0.0
        %571 = vmatpush1.msra.mxu0 0.0
        %572 = vmatprep.subr.mxu0 0.0
        %573 = vmatpush1.msra.mxu0 0.0
        %574 = vmatprep.subr.mxu0 0.0
        %575 = vmatpush1.msra.mxu0 0.0
        %576 = vmatprep.subr.mxu0 0.0
        %577 = vmatpush1.msra.mxu0 0.0
        %578 = vmatprep.subr.mxu0 0.0
        %579 = vmatpush1.msra.mxu0 0.0
        %580 = vmatprep.subr.mxu0 0.0
        %581 = vmatpush1.msra.mxu0 0.0
        %582 = vmatprep.subr.mxu0 0.0
        %583 = vmatpush1.msra.mxu0 0.0
        %584 = vmatprep.subr.mxu0 0.0
        %585 = vmatpush1.msra.mxu0 0.0
        %586 = vmatprep.subr.mxu0 0.0
        %587 = vmatpush1.msra.mxu0 0.0
        %588 = vmatprep.subr.mxu0 0.0
        %589 = vmatpush1.msra.mxu0 0.0
        %590 = vmatprep.subr.mxu0 0.0
        %591 = vmatpush1.msra.mxu0 0.0
        %592 = vmatprep.subr.mxu0 0.0
        %593 = vmatpush1.msra.mxu0 0.0
        %594 = vmatprep.subr.mxu0 0.0
        %595 = vmatpush1.msra.mxu0 0.0
        %596 = vmatprep.subr.mxu0 0.0
        %597 = vmatpush1.msra.mxu0 0.0
        %598 = vmatprep.subr.mxu0 0.0
        %599 = vmatpush1.msra.mxu0 0.0
        %600 = vmatprep.subr.mxu0 0.0
        %601 = vmatpush1.msra.mxu0 0.0
        %602 = vmatprep.subr.mxu0 0.0
        %603 = vmatpush1.msra.mxu0 0.0
        %604 = vmatprep.subr.mxu0 0.0
        %605 = vmatpush1.msra.mxu0 0.0
        %606 = vmatprep.subr.mxu0 0.0
        %607 = vmatpush1.msra.mxu0 0.0
        %608 = vmatprep.subr.mxu0 0.0
        %609 = vmatpush1.msra.mxu0 0.0
        %610 = vmatprep.subr.mxu0 0.0
        %611 = vmatpush1.msra.mxu0 0.0
        %612 = vmatprep.subr.mxu0 0.0
        %613 = vmatpush1.msra.mxu0 0.0
        %614 = vmatprep.subr.mxu0 0.0
        %615 = vmatpush1.msra.mxu0 0.0
        %616 = vmatprep.subr.mxu0 0.0
        %617 = vmatpush1.msra.mxu0 0.0
        %618 = vmatprep.subr.mxu0 0.0
        %619 = vmatpush1.msra.mxu0 0.0
        %620 = vmatprep.subr.mxu0 0.0
        %621 = vmatpush1.msra.mxu0 0.0
        %622 = vmatprep.subr.mxu0 0.0
        %623 = vmatpush1.msra.mxu0 0.0
        %624 = vmatprep.subr.mxu0 0.0
        %625 = vmatpush1.msra.mxu0 0.0
        %626 = vmatprep.subr.mxu0 0.0
        %627 = vmatpush1.msra.mxu0 0.0
        %628 = vmatprep.subr.mxu0 0.0
        %629 = vmatpush1.msra.mxu0 0.0
        %630 = vmatprep.subr.mxu0 0.0
        %631 = vmatpush1.msra.mxu0 0.0
        %632 = vmatprep.mubr.f32.mxu0 0.0
        %633 = vmatmul.mubr.f32.gmra.mrb[0].mxu0 %v566
        %v634 = vpop.f32.mrb[0].mxu0
        %v635 = vadd.f32 0.0, %v634
        %v636 = vpop.f32.mrb[0].mxu0
        %637 = vdwg.mxu0
        %v639 = vsel %vm538, %v560, 0
        %641 = vmatprep.subr.mxu0 0.0
        %642 = vmatpush1.msra.mxu0 %v564
        %643 = vmatprep.subr.mxu0 0.0
        %644 = vmatpush1.msra.mxu0 0.0
        %645 = vmatprep.subr.mxu0 0.0
        %646 = vmatpush1.msra.mxu0 0.0
        %647 = vmatprep.subr.mxu0 0.0
        %648 = vmatpush1.msra.mxu0 0.0
        %649 = vmatprep.subr.mxu0 0.0
        %650 = vmatpush1.msra.mxu0 0.0
        %651 = vmatprep.subr.mxu0 0.0
        %652 = vmatpush1.msra.mxu0 0.0
        %653 = vmatprep.subr.mxu0 0.0
        %654 = vmatpush1.msra.mxu0 0.0
        %655 = vmatprep.subr.mxu0 0.0
        %656 = vmatpush1.msra.mxu0 0.0
        %657 = vmatprep.subr.mxu0 0.0
        %658 = vmatpush1.msra.mxu0 0.0
        %659 = vmatprep.subr.mxu0 0.0
        %660 = vmatpush1.msra.mxu0 0.0
        %661 = vmatprep.subr.mxu0 0.0
        %662 = vmatpush1.msra.mxu0 0.0
        %663 = vmatprep.subr.mxu0 0.0
        %664 = vmatpush1.msra.mxu0 0.0
        %665 = vmatprep.subr.mxu0 0.0
        %666 = vmatpush1.msra.mxu0 0.0
        %667 = vmatprep.subr.mxu0 0.0
        %668 = vmatpush1.msra.mxu0 0.0
        %669 = vmatprep.subr.mxu0 0.0
        %670 = vmatpush1.msra.mxu0 0.0
        %671 = vmatprep.subr.mxu0 0.0
        %672 = vmatpush1.msra.mxu0 0.0
        %673 = vmatprep.subr.mxu0 0.0
        %674 = vmatpush1.msra.mxu0 0.0
        %675 = vmatprep.subr.mxu0 0.0
        %676 = vmatpush1.msra.mxu0 0.0
        %677 = vmatprep.subr.mxu0 0.0
        %678 = vmatpush1.msra.mxu0 0.0
        %679 = vmatprep.subr.mxu0 0.0
        %680 = vmatpush1.msra.mxu0 0.0
        %681 = vmatprep.subr.mxu0 0.0
        %682 = vmatpush1.msra.mxu0 0.0
        %683 = vmatprep.subr.mxu0 0.0
        %684 = vmatpush1.msra.mxu0 0.0
        %685 = vmatprep.subr.mxu0 0.0
        %686 = vmatpush1.msra.mxu0 0.0
        %687 = vmatprep.subr.mxu0 0.0
        %688 = vmatpush1.msra.mxu0 0.0
        %689 = vmatprep.subr.mxu0 0.0
        %690 = vmatpush1.msra.mxu0 0.0
        %691 = vmatprep.subr.mxu0 0.0
        %692 = vmatpush1.msra.mxu0 0.0
        %693 = vmatprep.subr.mxu0 0.0
        %694 = vmatpush1.msra.mxu0 0.0
        %695 = vmatprep.subr.mxu0 0.0
        %696 = vmatpush1.msra.mxu0 0.0
        %697 = vmatprep.subr.mxu0 0.0
        %698 = vmatpush1.msra.mxu0 0.0
        %699 = vmatprep.subr.mxu0 0.0
        %700 = vmatpush1.msra.mxu0 0.0
        %701 = vmatprep.subr.mxu0 0.0
        %702 = vmatpush1.msra.mxu0 0.0
        %703 = vmatprep.subr.mxu0 0.0
        %704 = vmatpush1.msra.mxu0 0.0
        %705 = vmatprep.mubr.f32.mxu0 0.0
        %706 = vmatmul.mubr.f32.gmra.mrb[0].mxu0 %v639
        %v707 = vpop.f32.mrb[0].mxu0
        %v708 = vadd.f32 0.0, %v707
        %v709 = vpop.f32.mrb[0].mxu0
        %710 = vdwg.mxu0
        %711 = vst.msk [vmem:[%s362] sm:$0xff] %vm379, %v635
        %712 = vst.msk [vmem:[%s362 + $0x8] sm:$0xff] %vm379, %v708
        %s713 = sand.u32 %s158, 1
        %s714 = scalar_lea.sflag [#allocation4], %s713
        %s715 = sand.u32 %s158, 1
        %s716 = smul.addr %s715, 16
        %s717 = scalar_lea.vmem [#allocation10], %s716
        %s718 = sand.u32 %s186, 1
        %s719 = scalar_lea.sflag [#allocation12], %s718
        %s720 = sand.u32 %s186, 1
        %s721 = smul.addr %s720, 16
        %s722 = scalar_lea.vmem [#allocation11], %s721
        // Predicated region
        $region53: #{tpu_custom_call.1} parent=35 // pred_check
          %p723 = pneg %p168
        $region54: #{tpu_custom_call.1} parent=35 // pred_check_branch
          %725 = sbr.rel (%p723) target = $region56
        $region55: #{tpu_custom_call.1} parent=35 // pred_region
          %s726 = smul.u32 2, %s34
          %s728 = ssub.s32 256, 256
          %729 = vsyncadd %s714, %s728
          %s730 = sadd.s32 %s35, %s726
          %s731 = smul.addr %s730, 128
          %s732 = scalar_lea.hbm %s4, %s731
          %s733 = sshll.u32 %s717, 4
          %s734 = int_to_ptr.vmem [resolvable:$true] %s733
          %739 = dma.vmem_to_hbm [thread:$0]  %s734, 256, %s732, %s714, 128, 128, 8
        $region56: #{tpu_custom_call.1} parent=35 // pred_fallthru
          _
        // Predicated region
        $region57: #{tpu_custom_call.1} parent=35 // pred_check
          %p740 = pneg %p196
        $region58: #{tpu_custom_call.1} parent=35 // pred_check_branch
          %742 = sbr.rel (%p740) target = $region60
        $region59: #{tpu_custom_call.1} parent=35 // pred_region
          %s743 = smul.u32 2, %s34
          %s745 = ssub.s32 256, 256
          %746 = vsyncadd %s719, %s745
          %s747 = sadd.s32 %s35, %s743
          %s748 = smul.addr %s747, 128
          %s749 = scalar_lea.hbm %s5, %s748
          %s750 = sshll.u32 %s722, 4
          %s751 = int_to_ptr.vmem [resolvable:$true] %s750
          %756 = dma.vmem_to_hbm [thread:$0]  %s751, 256, %s749, %s719, 128, 128, 8
        $region60: #{tpu_custom_call.1} parent=35 // pred_fallthru
          _
      $region36: #{tpu_custom_call.1} parent=5 // pred_fallthru
        _
      %p757 = scmp.le.s32.totalorder 2, %s25
      // Predicated region
      $region61: #{tpu_custom_call.1} parent=5 // pred_check
        %p758 = pneg %p757
      $region62: #{tpu_custom_call.1} parent=5 // pred_check_branch
        %760 = sbr.rel (%p758) target = $region64
      $region63: #{tpu_custom_call.1} parent=5 // pred_region
        %s761 = ssub.s32 %s25, 2
        // Predicated region
        $region65: #{tpu_custom_call.1} parent=63 // pred_check
          %p762 = pneg %p174
        $region66: #{tpu_custom_call.1} parent=63 // pred_check_branch
          %764 = sbr.rel (%p762) target = $region68
        $region67: #{tpu_custom_call.1} parent=63 // pred_region
          %s765 = sand.u32 %s159, 1
          %s766 = scalar_lea.sflag [#allocation4], %s765
          %s767 = sand.u32 %s159, 1
          %s768 = smul.addr %s767, 16
          %s769 = scalar_lea.vmem [#allocation10], %s768
          %770 = dma.done %s766, 256
        $region68: #{tpu_custom_call.1} parent=63 // pred_fallthru
          _
        // Predicated region
        $region69: #{tpu_custom_call.1} parent=63 // pred_check
          %p771 = pneg %p202
        $region70: #{tpu_custom_call.1} parent=63 // pred_check_branch
          %773 = sbr.rel (%p771) target = $region72
        $region71: #{tpu_custom_call.1} parent=63 // pred_region
          %s774 = sand.u32 %s187, 1
          %s775 = scalar_lea.sflag [#allocation12], %s774
          %s776 = sand.u32 %s187, 1
          %s777 = smul.addr %s776, 16
          %s778 = scalar_lea.vmem [#allocation11], %s777
          %779 = dma.done %s775, 256
        $region72: #{tpu_custom_call.1} parent=63 // pred_fallthru
          _
      $region64: #{tpu_custom_call.1} parent=5 // pred_fallthru
        _
    $region6: #{tpu_custom_call.1} parent=1 // loop_footer
      %s29 = sadd.s32 1, %s25
    $region7: #{tpu_custom_call.1} parent=1 // loop_footer_branch
      %24 = sbr.rel target = $region3
    $region8: #{tpu_custom_call.1} parent=1 // loop_exit
      _
    %780 = vsyncpa [#allocation3], 1
    %s781 = scalar_lea.sflag [#allocation3], 1
    %782 = vsyncpa %s781, 1
    %783 = vsyncpa [#allocation6], 1
    %s784 = scalar_lea.sflag [#allocation6], 1
    %785 = vsyncpa %s784, 1
    %786 = vsyncpa [#allocation9], 1
    %s787 = scalar_lea.sflag [#allocation9], 1
    %788 = vsyncpa %s787, 1
    %789 = vsyncpa [#allocation4], 1
    %s790 = scalar_lea.sflag [#allocation4], 1
    %791 = vsyncpa %s790, 1
    %792 = vsyncpa [#allocation12], 1
    %s793 = scalar_lea.sflag [#allocation12], 1
    %794 = vsyncpa %s793, 1

</llo_original>
